<compile_context>
chip_gen: v5e
topology: v5e:2x2
jax: 0.10.0
libtpu: 0.0.40
codegen_flags: <defaults>
</compile_context>

<pallas_src>
import functools

import jax
import jax.numpy as jnp
from jax.experimental import pallas as pl
from jax.experimental.pallas import tpu as pltpu


def _round_up(x, m):
    return (x + m - 1) // m * m


def _pad2d(a, rows, cols):
    return jnp.pad(a, ((0, rows - a.shape[0]), (0, cols - a.shape[1])))


# ----------------------------------------------------------------------------
# Kernel 1: one GCN layer   out = relu(A_hat @ H @ Wt + b)
# grid = (row_tiles, k_tiles); acc = f32 VMEM scratch of shape (tile_m, F_in).
# ----------------------------------------------------------------------------
def gcn_kernel(a_ref, h_ref, wt_ref, b_ref, o_ref, acc_ref):
    k = pl.program_id(1)

    @pl.when(k == 0)
    def _():
        acc_ref[...] = jnp.zeros_like(acc_ref)

    # Aggregate: acc += A[i, k] @ H[k]   (bf16 x bf16 -> f32 accumulate)
    acc_ref[...] += jnp.dot(a_ref[...], h_ref[...],
                            preferred_element_type=jnp.float32)

    @pl.when(k == pl.num_programs(1) - 1)
    def _():
        # Feature transform + bias + relu once per row tile.
        agg = acc_ref[...].astype(wt_ref.dtype)
        y = jnp.dot(agg, wt_ref[...], preferred_element_type=jnp.float32)
        y = y + b_ref[...]
        o_ref[...] = jnp.maximum(y, 0.0).astype(o_ref.dtype)


# ----------------------------------------------------------------------------
# Kernel 2: fused 8-layer MLP (encoder + decoder), row tiled.
# Weights pre-transposed [in, out]; biases concatenated into one [1, sum] row.
# ----------------------------------------------------------------------------
def mlp_kernel(h_ref, we1, we2, we3, wz, wd1, wd2, wd3, wx, bcat_ref,
               xbar_ref, z_ref, *, widths):
    f32 = jnp.float32
    bcat = bcat_ref[...]
    offs = [0]
    for w in widths:
        offs.append(offs[-1] + w)

    def lin(h, w_ref, j):
        y = jnp.dot(h.astype(w_ref.dtype), w_ref[...],
                    preferred_element_type=f32)
        return y + bcat[:, offs[j]:offs[j + 1]]

    relu = lambda t: jnp.maximum(t, 0.0)

    h = h_ref[...]
    h1 = relu(lin(h, we1, 0))
    h2 = relu(lin(h1, we2, 1))
    h3 = relu(lin(h2, we3, 2))
    z = lin(h3, wz, 3)
    d1 = relu(lin(z, wd1, 4))
    d2 = relu(lin(d1, wd2, 5))
    d3 = relu(lin(d2, wd3, 6))
    xb = lin(d3, wx, 7)

    xbar_ref[...] = xb.astype(xbar_ref.dtype)
    z_ref[...] = z.astype(z_ref.dtype)


# ----------------------------------------------------------------------------
# Wrapper: pad / transpose / cast operands, launch the two kernels.
# ----------------------------------------------------------------------------
def ae_forward(x, a_hat, params, *, compute_dtype=jnp.bfloat16,
               tile_m_max=256):
    n, n_input = x.shape
    cd = jnp.dtype(compute_dtype)
    cd_size = cd.itemsize

    # ---- padded sizes ------------------------------------------------------
    n_pad = _round_up(n, 128)
    tile_m = min(tile_m_max, n_pad)
    n_pad = _round_up(n_pad, tile_m)
    tile_k = 128

    in_p = _round_up(n_input, 128)
    order = ["enc_1", "enc_2", "enc_3", "z_layer",
             "dec_1", "dec_2", "dec_3", "x_bar_layer"]
    out_dims = [params[name][0].shape[0] for name in order]
    out_p = [_round_up(d, 128) for d in out_dims]
    n_z = params["z_layer"][0].shape[0]
    nz_p = out_p[3]

    # ---- wrapper-side layout plumbing (pad, pre-transpose, cast) -----------
    a_pad = _pad2d(a_hat.astype(jnp.float32), n_pad, n_pad).astype(cd)
    x_pad = _pad2d(x.astype(jnp.float32), n_pad, in_p).astype(cd)

    def prep_w(name, rows_p, cols_p):
        w, _ = params[name]                                   # torch [out, in]
        wt = _pad2d(w.T.astype(jnp.float32), rows_p, cols_p)  # -> [in_p, out_p]
        return wt.astype(cd)

    def prep_b(name, cols_p):
        _, b = params[name]
        return _pad2d(b.reshape(1, -1).astype(jnp.float32), 1, cols_p)

    wg1, bg1 = prep_w("conv11", in_p, in_p), prep_b("conv11", in_p)
    wg2, bg2 = prep_w("conv12", in_p, in_p), prep_b("conv12", in_p)

    mlp_in_p = [in_p] + out_p[:-1]
    mlp_w = [prep_w(nm, ip, op) for nm, ip, op in zip(order, mlp_in_p, out_p)]
    b_cat = jnp.concatenate([prep_b(nm, op) for nm, op in zip(order, out_p)],
                            axis=1)

    vmem_limit = 32 * 1024 * 1024  # tiny tiles; safe on v5e/v6e/v7x

    # ---- GCN layer launcher --------------------------------------------------
    def gcn_layer(h_pad, wt, b):
        f_in = h_pad.shape[1]
        f_out = wt.shape[1]
        grid = (n_pad // tile_m, n_pad // tile_k)
        cost = pl.CostEstimate(
            flops=2 * n_pad * n_pad * f_in + 2 * n_pad * f_in * f_out,
            transcendentals=0,
            bytes_accessed=int((n_pad * n_pad + n_pad * f_in + f_in * f_out
                                + n_pad * f_out) * cd_size + f_out * 4))
        return pl.pallas_call(
            gcn_kernel,
            out_shape=jax.ShapeDtypeStruct((n_pad, f_out), cd),
            grid_spec=pltpu.PrefetchScalarGridSpec(
                num_scalar_prefetch=0,
                grid=grid,
                in_specs=[
                    pl.BlockSpec((tile_m, tile_k), lambda i, k: (i, k)),  # A
                    pl.BlockSpec((tile_k, f_in), lambda i, k: (k, 0)),    # H rows
                    pl.BlockSpec((f_in, f_out), lambda i, k: (0, 0)),     # Wt
                    pl.BlockSpec((1, f_out), lambda i, k: (0, 0)),        # bias
                ],
                out_specs=pl.BlockSpec((tile_m, f_out), lambda i, k: (i, 0)),
                scratch_shapes=[pltpu.VMEM((tile_m, f_in), jnp.float32)],
            ),
            compiler_params=pltpu.CompilerParams(
                dimension_semantics=("parallel", "arbitrary"),
                vmem_limit_bytes=vmem_limit),
            cost_estimate=cost,
        )(a_pad, h_pad, wt, b)

    # Two GCN layers: A_hat is necessarily streamed twice (layer 2 needs all of
    # layer-1's output rows before any of its own rows can be aggregated).
    h1 = gcn_layer(x_pad, wg1, bg1)
    h2 = gcn_layer(h1, wg2, bg2)

    # ---- fused MLP (encoder + decoder) --------------------------------------
    widths = tuple(out_p)
    mlp_flops = 0
    prev = in_p
    for op in out_p:
        mlp_flops += 2 * n_pad * prev * op
        prev = op
    mlp_bytes = int((n_pad * in_p
                     + sum(ip * op for ip, op in zip(mlp_in_p, out_p))) * cd_size
                    + b_cat.size * 4 + (n_pad * in_p + n_pad * nz_p) * 4)

    full_spec = lambda arr: pl.BlockSpec(arr.shape, lambda i: (0, 0))

    x_bar_pad, z_pad = pl.pallas_call(
        functools.partial(mlp_kernel, widths=widths),
        out_shape=(
            jax.ShapeDtypeStruct((n_pad, in_p), jnp.float32),
            jax.ShapeDtypeStruct((n_pad, nz_p), jnp.float32),
        ),
        grid_spec=pltpu.PrefetchScalarGridSpec(
            num_scalar_prefetch=0,
            grid=(n_pad // tile_m,),
            in_specs=([pl.BlockSpec((tile_m, in_p), lambda i: (i, 0))]
                      + [full_spec(w) for w in mlp_w]
                      + [full_spec(b_cat)]),
            out_specs=(
                pl.BlockSpec((tile_m, in_p), lambda i: (i, 0)),
                pl.BlockSpec((tile_m, nz_p), lambda i: (i, 0)),
            ),
        ),
        compiler_params=pltpu.CompilerParams(
            dimension_semantics=("parallel",),
            vmem_limit_bytes=vmem_limit),
        cost_estimate=pl.CostEstimate(flops=mlp_flops, transcendentals=0,
                                      bytes_accessed=mlp_bytes),
    )(h2, *mlp_w, b_cat)

    return x_bar_pad[:n, :n_input], z_pad[:n, :n_z]


# ----------------------------------------------------------------------------
# Glue: dense normalized adjacency (scatter-add, plain JAX outside the kernel).
# Note: assumes a simple edge list without pre-existing self loops / duplicates
# (matches the PyG default on coalesced graphs).
# ----------------------------------------------------------------------------
def gcn_norm_adj(edge_index, n):
    src, dst = edge_index[0], edge_index[1]
    loops = jnp.arange(n, dtype=src.dtype)
    src = jnp.concatenate([src, loops])
    dst = jnp.concatenate([dst, loops])
    a = jnp.zeros((n, n), jnp.float32).at[dst, src].add(1.0)
    deg = a.sum(axis=1)
    dinv = jnp.where(deg > 0, 1.0 / jnp.sqrt(deg), 0.0)
    return dinv[:, None] * a * dinv[None, :]


def init_linear(key, out_dim, in_dim):
    kw, kb = jax.random.split(key)
    bound = 1.0 / jnp.sqrt(jnp.float32(in_dim))
    w = jax.random.uniform(kw, (out_dim, in_dim), jnp.float32, -bound, bound)
    b = jax.random.uniform(kb, (out_dim,), jnp.float32, -bound, bound)
    return w, b


def make_params(key, n_enc_1, n_enc_2, n_enc_3, n_dec_1, n_dec_2, n_dec_3,
                n_input, n_z):
    shapes = {
        "conv11": (n_input, n_input),
        "conv12": (n_input, n_input),
        "enc_1": (n_enc_1, n_input),
        "enc_2": (n_enc_2, n_enc_1),
        "enc_3": (n_enc_3, n_enc_2),
        "z_layer": (n_z, n_enc_3),
        "dec_1": (n_dec_1, n_z),
        "dec_2": (n_dec_2, n_dec_1),
        "dec_3": (n_dec_3, n_dec_2),
        "x_bar_layer": (n_input, n_dec_3),
    }
    params = {}
    for i, (name, (o, ii)) in enumerate(shapes.items()):
        params[name] = init_linear(jax.random.fold_in(key, i), o, ii)
    return params


# ----------------------------------------------------------------------------
# Pure-JAX reference with matched (bf16-compute / f32-accumulate) precision.
# ----------------------------------------------------------------------------
def ae_forward_ref(x, a_hat, params, *, compute_dtype=jnp.bfloat16):
    cd = compute_dtype
    f32 = jnp.float32
    relu = lambda t: jnp.maximum(t, 0.0)
    a = a_hat.astype(cd)

    def gcn(h, p):
        agg = jnp.dot(a, h, preferred_element_type=f32)
        y = jnp.dot(agg.astype(cd), p[0].T.astype(cd),
                    preferred_element_type=f32) + p[1]
        return relu(y).astype(cd)

    def lin(h, p):
        return jnp.dot(h.astype(cd), p[0].T.astype(cd),
                       preferred_element_type=f32) + p[1]

    h = gcn(x.astype(cd), params["conv11"])
    h = gcn(h, params["conv12"])
    h1 = relu(lin(h, params["enc_1"]))
    h2 = relu(lin(h1, params["enc_2"]))
    h3 = relu(lin(h2, params["enc_3"]))
    z = lin(h3, params["z_layer"])
    d1 = relu(lin(z, params["dec_1"]))
    d2 = relu(lin(d1, params["dec_2"]))
    d3 = relu(lin(d2, params["dec_3"]))
    x_bar = lin(d3, params["x_bar_layer"])
    return x_bar, z


if __name__ == "__main__":
    N = 8
    n_input = 16
    n_enc_1, n_enc_2, n_enc_3 = 32, 32, 16
    n_dec_1, n_dec_2, n_dec_3 = 16, 32, 32
    n_z = 8

    key = jax.random.PRNGKey(0)
    k_x, k_p = jax.random.split(key)
    x = jax.random.normal(k_x, (N, n_input), jnp.float32)

    # Bidirectional ring graph: edge_index shape [2, 2N].
    idx = jnp.arange(N, dtype=jnp.int32)
    nxt = (idx + 1) % N
    edge_index = jnp.stack([jnp.concatenate([idx, nxt]),
                            jnp.concatenate([nxt, idx])])

    a_hat = gcn_norm_adj(edge_index, N)
    params = make_params(k_p, n_enc_1, n_enc_2, n_enc_3,
                         n_dec_1, n_dec_2, n_dec_3, n_input, n_z)

    x_bar, z = jax.block_until_ready(ae_forward(x, a_hat, params))
    x_bar_ref, z_ref = ae_forward_ref(x, a_hat, params)

    assert x_bar.shape == (N, n_input) and z.shape == (N, n_z)
    assert jnp.allclose(x_bar, x_bar_ref, atol=2e-2, rtol=2e-2), \
        float(jnp.max(jnp.abs(x_bar - x_bar_ref)))
    assert jnp.allclose(z, z_ref, atol=2e-2, rtol=2e-2), \
        float(jnp.max(jnp.abs(z - z_ref)))

    print("KERNEL_OK")
</pallas_src>

<mosaic_0001>
module attributes {stable_mosaic.version = 11 : i64} {
  func.func @gcn_kernel(%arg0: i32, %arg1: i32, %arg2: memref<128x128xbf16, #tpu.memory_space<vmem>>, %arg3: memref<128x128xbf16, #tpu.memory_space<vmem>>, %arg4: memref<128x128xbf16, #tpu.memory_space<vmem>>, %arg5: memref<1x128xf32, #tpu.memory_space<vmem>>, %arg6: memref<128x128xbf16, #tpu.memory_space<vmem>>, %arg7: memref<128x128xf32, #tpu.memory_space<vmem>>) attributes {dimension_semantics = [#tpu.dimension_semantics<parallel>, #tpu.dimension_semantics<arbitrary>], iteration_bounds = array<i64: 1, 1>, scalar_prefetch = 0 : i64, scratch_operands = 1 : i64, tpu.core_type = #tpu.core_type<tc>, window_params = [{transform_indices = @transform_0, window_bounds = array<i64: 128, 128>}, {transform_indices = @transform_1, window_bounds = array<i64: 128, 128>}, {pipeline_mode = #tpu.pipeline_mode<synchronous>, transform_indices = @transform_2, window_bounds = array<i64: 128, 128>}, {pipeline_mode = #tpu.pipeline_mode<synchronous>, transform_indices = @transform_3, window_bounds = array<i64: 1, 128>}, {transform_indices = @transform_4, window_bounds = array<i64: 128, 128>}]} {
    %c0_i32 = arith.constant 0 : i32
    %0 = arith.cmpi eq, %arg1, %c0_i32 : i32
    %1 = arith.extui %0 : i1 to i32
    %c0_i32_0 = arith.constant 0 : i32
    %2 = arith.cmpi ne, %1, %c0_i32_0 : i32
    scf.if %2 {
      %cst_10 = arith.constant 0.000000e+00 : f32
      %12 = vector.broadcast %cst_10 : f32 to vector<128x128xf32>
      %c0_11 = arith.constant 0 : index
      %c0_12 = arith.constant 0 : index
      %13 = vector.load %arg7[%c0_11, %c0_12] : memref<128x128xf32, #tpu.memory_space<vmem>>, vector<128x128xf32>
      tpu.vector_store %arg7[%c0_11, %c0_12], %12 {strides = array<i32>} : memref<128x128xf32, #tpu.memory_space<vmem>>, vector<128x128xf32>,
    } else {
    }
    %c0 = arith.constant 0 : index
    %c0_1 = arith.constant 0 : index
    %3 = vector.load %arg7[%c0, %c0_1] : memref<128x128xf32, #tpu.memory_space<vmem>>, vector<128x128xf32>
    %c0_2 = arith.constant 0 : index
    %c0_3 = arith.constant 0 : index
    %4 = vector.load %arg2[%c0_2, %c0_3] : memref<128x128xbf16, #tpu.memory_space<vmem>>, vector<128x128xbf16>
    %c0_4 = arith.constant 0 : index
    %c0_5 = arith.constant 0 : index
    %5 = vector.load %arg3[%c0_4, %c0_5] : memref<128x128xbf16, #tpu.memory_space<vmem>>, vector<128x128xbf16>
    %cst = arith.constant dense<0.000000e+00> : vector<128x128xf32>
    %6 = tpu.matmul %4, %5, %cst {dimension_numbers = #tpu.dot_dimension_numbers<[1], [0], [0], [1], [0, 0, 1, 1], [], []>} : vector<128x128xbf16>, vector<128x128xbf16>, vector<128x128xf32> -> vector<128x128xf32>
    %7 = arith.addf %3, %6 : vector<128x128xf32>
    %c0_6 = arith.constant 0 : index
    %c0_7 = arith.constant 0 : index
    %8 = vector.load %arg7[%c0_6, %c0_7] : memref<128x128xf32, #tpu.memory_space<vmem>>, vector<128x128xf32>
    tpu.vector_store %arg7[%c0_6, %c0_7], %7 {strides = array<i32>} : memref<128x128xf32, #tpu.memory_space<vmem>>, vector<128x128xf32>,
    %c0_i32_8 = arith.constant 0 : i32
    %9 = arith.cmpi eq, %arg1, %c0_i32_8 : i32
    %10 = arith.extui %9 : i1 to i32
    %c0_i32_9 = arith.constant 0 : i32
    %11 = arith.cmpi ne, %10, %c0_i32_9 : i32
    scf.if %11 {
      %c0_10 = arith.constant 0 : index
      %c0_11 = arith.constant 0 : index
      %12 = vector.load %arg7[%c0_10, %c0_11] : memref<128x128xf32, #tpu.memory_space<vmem>>, vector<128x128xf32>
      %13 = arith.truncf %12 : vector<128x128xf32> to vector<128x128xbf16>
      %c0_12 = arith.constant 0 : index
      %c0_13 = arith.constant 0 : index
      %14 = vector.load %arg4[%c0_12, %c0_13] : memref<128x128xbf16, #tpu.memory_space<vmem>>, vector<128x128xbf16>
      %cst_14 = arith.constant dense<0.000000e+00> : vector<128x128xf32>
      %15 = tpu.matmul %13, %14, %cst_14 {dimension_numbers = #tpu.dot_dimension_numbers<[1], [0], [0], [1], [0, 0, 1, 1], [], []>} : vector<128x128xbf16>, vector<128x128xbf16>, vector<128x128xf32> -> vector<128x128xf32>
      %c0_15 = arith.constant 0 : index
      %c0_16 = arith.constant 0 : index
      %16 = vector.load %arg5[%c0_15, %c0_16] : memref<1x128xf32, #tpu.memory_space<vmem>>, vector<1x128xf32>
      %17 = vector.broadcast %16 : vector<1x128xf32> to vector<128x128xf32>
      %18 = arith.addf %15, %17 : vector<128x128xf32>
      %cst_17 = arith.constant 0.000000e+00 : f32
      %19 = vector.broadcast %cst_17 : f32 to vector<128x128xf32>
      %20 = arith.maximumf %18, %19 : vector<128x128xf32>
      %21 = arith.truncf %20 : vector<128x128xf32> to vector<128x128xbf16>
      %c0_18 = arith.constant 0 : index
      %c0_19 = arith.constant 0 : index
      %22 = vector.load %arg6[%c0_18, %c0_19] : memref<128x128xbf16, #tpu.memory_space<vmem>>, vector<128x128xbf16>
      tpu.vector_store %arg6[%c0_18, %c0_19], %21 {strides = array<i32>} : memref<128x128xbf16, #tpu.memory_space<vmem>>, vector<128x128xbf16>,
    } else {
    }
    return
  }
  func.func @transform_0(%arg0: i32, %arg1: i32) -> (i32, i32) {
    %c0_i32 = arith.constant 0 : i32
    return %arg0, %arg1 : i32, i32
  }
  func.func @transform_1(%arg0: i32, %arg1: i32) -> (i32, i32) {
    %c0_i32 = arith.constant 0 : i32
    %c0_i32_0 = arith.constant 0 : i32
    return %arg1, %c0_i32 : i32, i32
  }
  func.func @transform_2(%arg0: i32, %arg1: i32) -> (i32, i32) {
    %c0_i32 = arith.constant 0 : i32
    %c0_i32_0 = arith.constant 0 : i32
    %c0_i32_1 = arith.constant 0 : i32
    return %c0_i32, %c0_i32_0 : i32, i32
  }
  func.func @transform_3(%arg0: i32, %arg1: i32) -> (i32, i32) {
    %c0_i32 = arith.constant 0 : i32
    %c0_i32_0 = arith.constant 0 : i32
    %c0_i32_1 = arith.constant 0 : i32
    return %c0_i32, %c0_i32_0 : i32, i32
  }
  func.func @transform_4(%arg0: i32, %arg1: i32) -> (i32, i32) {
    %c0_i32 = arith.constant 0 : i32
    %c0_i32_0 = arith.constant 0 : i32
    return %arg0, %c0_i32 : i32, i32
  }
}

</mosaic_0001>

<llo_original>
// kernel: tpu_custom_call.1
$region0: #{tpu_custom_call.1}
  #allocation0 [shape = 'u32[]', space=smem, size = 0x4, offset = 0x4, fixed_abs, tag = 'smem constant byte address 0x4 - core index']
  #allocation1 [shape = 'u32[72,128]{1,0:T(1,128)}', space=vmem, size = 0x9000, scoped, tag = 'internal scratch']
  #allocation2 [shape = 'f32[128,128]{1,0:T(8,128)}', space=vmem, size = 0x10000, scoped, tag = 'scratch operand']
  %s0 = inlined_call_operand.hbm [shape: bf16[128,128], index: 0, kind: input, shape index: {}]
  %s1 = inlined_call_operand.hbm [shape: bf16[128,128], index: 1, kind: input, shape index: {}]
  %s2 = inlined_call_operand.hbm [shape: bf16[128,128], index: 2, kind: input, shape index: {}]
  %s3 = inlined_call_operand.vmem [shape: f32[1,128], index: 3, kind: input, shape index: {}]
  %s4 = inlined_call_operand.hbm [shape: bf16[128,128], index: 4, kind: output, shape index: {}]
  %s5 = sld [smem:[#allocation0]]
  $region46: #{tpu_custom_call.1} parent=0
    _
  %s7 = ssub.s32 1, %s5
  %s8 = scalar_select 0, %s7, %s5
  $region1: #{tpu_custom_call.1} parent=0
    #allocation3 [shape = 'u8[32768]{0}', space=vmem, size = 0x8000, scoped, tag = 'input window, operand 0, single buffered']
    #allocation4 [shape = 's32[1]{0}', space=sflag, size = 0x4, scoped, tag = 'scoped memory for tpu_custom_call.1']
    #allocation5 [shape = 's32[1]{0}', space=sflag, size = 0x4, scoped, tag = 'scoped memory for tpu_custom_call.1']
    #allocation6 [shape = 'u8[32768]{0}', space=vmem, size = 0x8000, scoped, tag = 'input window, operand 1, single buffered']
    #allocation7 [shape = 's32[1]{0}', space=sflag, size = 0x4, scoped, tag = 'scoped memory for tpu_custom_call.1']
    #allocation8 [shape = 'u8[32768]{0}', space=vmem, size = 0x8000, scoped, tag = 'input window, operand 2, single buffered']
    #allocation9 [shape = 'u8[32768]{0}', space=vmem, size = 0x8000, scoped, tag = 'output window, operand 0, single buffered']
    %9 = vsyncpa [#allocation4], 0
    %10 = vsyncpa [#allocation7], 0
    %11 = vsyncpa [#allocation5], 0
    // Predicated region
    $region2: #{tpu_custom_call.1} parent=1 // pred_check
      _
    $region3: #{tpu_custom_call.1} parent=1 // pred_check_branch
      %13 = sbr.rel (0) target = $region5
    $region4: #{tpu_custom_call.1} parent=1 // pred_region
      %15 = vsyncadd [#allocation4], 0
      %s16 = sshll.u32 %s0, 4
      %s17 = int_to_ptr.hbm [resolvable:$true] %s16
      %s18 = sshll.u32 [#allocation3], 4
      %s19 = int_to_ptr.vmem [resolvable:$true] %s18
      %24 = dma.hbm_to_vmem [thread:$0]  %s17, 1024, %s19, [#allocation4], 64, 64, 4
    $region5: #{tpu_custom_call.1} parent=1 // pred_fallthru
      _
    // Predicated region
    $region6: #{tpu_custom_call.1} parent=1 // pred_check
      _
    $region7: #{tpu_custom_call.1} parent=1 // pred_check_branch
      %26 = sbr.rel (0) target = $region9
    $region8: #{tpu_custom_call.1} parent=1 // pred_region
      %28 = vsyncadd [#allocation7], 0
      %s29 = sshll.u32 %s1, 4
      %s30 = int_to_ptr.hbm [resolvable:$true] %s29
      %s31 = sshll.u32 [#allocation6], 4
      %s32 = int_to_ptr.vmem [resolvable:$true] %s31
      %37 = dma.hbm_to_vmem [thread:$0]  %s30, 1024, %s32, [#allocation7], 64, 64, 4
    $region9: #{tpu_custom_call.1} parent=1 // pred_fallthru
      _
    // Predicated region
    $region10: #{tpu_custom_call.1} parent=1 // pred_check
      _
    $region11: #{tpu_custom_call.1} parent=1 // pred_check_branch
      %39 = sbr.rel (0) target = $region13
    $region12: #{tpu_custom_call.1} parent=1 // pred_region
      %41 = vsyncadd [#allocation7], 0
      %s42 = sshll.u32 %s2, 4
      %s43 = int_to_ptr.hbm [resolvable:$true] %s42
      %s44 = sshll.u32 [#allocation8], 4
      %s45 = int_to_ptr.vmem [resolvable:$true] %s44
      %50 = dma.hbm_to_vmem [thread:$0]  %s43, 1024, %s45, [#allocation7], 64, 64, 4
    $region13: #{tpu_custom_call.1} parent=1 // pred_fallthru
      _
    // Predicated region
    $region14: #{tpu_custom_call.1} parent=1 // pred_check
      _
    $region15: #{tpu_custom_call.1} parent=1 // pred_check_branch
      %52 = sbr.rel (0) target = $region17
    $region16: #{tpu_custom_call.1} parent=1 // pred_region
      _
    $region17: #{tpu_custom_call.1} parent=1 // pred_fallthru
      _
    // Predicated region
    $region18: #{tpu_custom_call.1} parent=1 // pred_check
      _
    $region19: #{tpu_custom_call.1} parent=1 // pred_check_branch
      %54 = sbr.rel (0) target = $region21
    $region20: #{tpu_custom_call.1} parent=1 // pred_region
      %56 = dma.done [#allocation4], 1024
    $region21: #{tpu_custom_call.1} parent=1 // pred_fallthru
      _
    // Predicated region
    $region22: #{tpu_custom_call.1} parent=1 // pred_check
      _
    $region23: #{tpu_custom_call.1} parent=1 // pred_check_branch
      %58 = sbr.rel (0) target = $region25
    $region24: #{tpu_custom_call.1} parent=1 // pred_region
      %60 = dma.done [#allocation7], 1024
    $region25: #{tpu_custom_call.1} parent=1 // pred_fallthru
      _
    // Predicated region
    $region26: #{tpu_custom_call.1} parent=1 // pred_check
      _
    $region27: #{tpu_custom_call.1} parent=1 // pred_check_branch
      %62 = sbr.rel (0) target = $region29
    $region28: #{tpu_custom_call.1} parent=1 // pred_region
      %64 = dma.done [#allocation7], 1024
    $region29: #{tpu_custom_call.1} parent=1 // pred_fallthru
      _
    %p65 = scmp.eq.s32.totalorder 0, 0
    // Predicated region
    $region30: #{tpu_custom_call.1} parent=1 // pred_check
      %p66 = pneg %p65
    $region31: #{tpu_custom_call.1} parent=1 // pred_check_branch
      %68 = sbr.rel (%p66) target = $region33
    $region32: #{tpu_custom_call.1} parent=1 // pred_region
      %69 = vst [vmem:[#allocation2] sm:$0xff] 0.0
      %70 = vst [vmem:[#allocation2 + $0x8] sm:$0xff] 0.0
      %71 = vst [vmem:[#allocation2 + $0x10] sm:$0xff] 0.0
      %72 = vst [vmem:[#allocation2 + $0x18] sm:$0xff] 0.0
      %73 = vst [vmem:[#allocation2 + $0x20] sm:$0xff] 0.0
      %74 = vst [vmem:[#allocation2 + $0x28] sm:$0xff] 0.0
      %75 = vst [vmem:[#allocation2 + $0x30] sm:$0xff] 0.0
      %76 = vst [vmem:[#allocation2 + $0x38] sm:$0xff] 0.0
      %77 = vst [vmem:[#allocation2 + $0x40] sm:$0xff] 0.0
      %78 = vst [vmem:[#allocation2 + $0x48] sm:$0xff] 0.0
      %79 = vst [vmem:[#allocation2 + $0x50] sm:$0xff] 0.0
      %80 = vst [vmem:[#allocation2 + $0x58] sm:$0xff] 0.0
      %81 = vst [vmem:[#allocation2 + $0x60] sm:$0xff] 0.0
      %82 = vst [vmem:[#allocation2 + $0x68] sm:$0xff] 0.0
      %83 = vst [vmem:[#allocation2 + $0x70] sm:$0xff] 0.0
      %84 = vst [vmem:[#allocation2 + $0x78] sm:$0xff] 0.0
    $region33: #{tpu_custom_call.1} parent=1 // pred_fallthru
      _
    %v85 = vld [vmem:[#allocation2] sm:$0xff]
    %v86 = vld [vmem:[#allocation2 + $0x8] sm:$0xff]
    %v87 = vld [vmem:[#allocation2 + $0x10] sm:$0xff]
    %v88 = vld [vmem:[#allocation2 + $0x18] sm:$0xff]
    %v89 = vld [vmem:[#allocation2 + $0x20] sm:$0xff]
    %v90 = vld [vmem:[#allocation2 + $0x28] sm:$0xff]
    %v91 = vld [vmem:[#allocation2 + $0x30] sm:$0xff]
    %v92 = vld [vmem:[#allocation2 + $0x38] sm:$0xff]
    %v93 = vld [vmem:[#allocation2 + $0x40] sm:$0xff]
    %v94 = vld [vmem:[#allocation2 + $0x48] sm:$0xff]
    %v95 = vld [vmem:[#allocation2 + $0x50] sm:$0xff]
    %v96 = vld [vmem:[#allocation2 + $0x58] sm:$0xff]
    %v97 = vld [vmem:[#allocation2 + $0x60] sm:$0xff]
    %v98 = vld [vmem:[#allocation2 + $0x68] sm:$0xff]
    %v99 = vld [vmem:[#allocation2 + $0x70] sm:$0xff]
    %v100 = vld [vmem:[#allocation2 + $0x78] sm:$0xff]
    %v101 = vld [vmem:[#allocation3] sm:$0xf]
    %v102 = vld [vmem:[#allocation3 + $0x4] sm:$0xf]
    %v103 = vld [vmem:[#allocation3 + $0x8] sm:$0xf]
    %v104 = vld [vmem:[#allocation3 + $0xc] sm:$0xf]
    %v105 = vld [vmem:[#allocation3 + $0x10] sm:$0xf]
    %v106 = vld [vmem:[#allocation3 + $0x14] sm:$0xf]
    %v107 = vld [vmem:[#allocation3 + $0x18] sm:$0xf]
    %v108 = vld [vmem:[#allocation3 + $0x1c] sm:$0xf]
    %v109 = vld [vmem:[#allocation3 + $0x20] sm:$0xf]
    %v110 = vld [vmem:[#allocation3 + $0x24] sm:$0xf]
    %v111 = vld [vmem:[#allocation3 + $0x28] sm:$0xf]
    %v112 = vld [vmem:[#allocation3 + $0x2c] sm:$0xf]
    %v113 = vld [vmem:[#allocation3 + $0x30] sm:$0xf]
    %v114 = vld [vmem:[#allocation3 + $0x34] sm:$0xf]
    %v115 = vld [vmem:[#allocation3 + $0x38] sm:$0xf]
    %v116 = vld [vmem:[#allocation3 + $0x3c] sm:$0xf]
    %v117 = vld [vmem:[#allocation6] sm:$0xf]
    %v118 = vld [vmem:[#allocation6 + $0x4] sm:$0xf]
    %v119 = vld [vmem:[#allocation6 + $0x8] sm:$0xf]
    %v120 = vld [vmem:[#allocation6 + $0xc] sm:$0xf]
    %v121 = vld [vmem:[#allocation6 + $0x10] sm:$0xf]
    %v122 = vld [vmem:[#allocation6 + $0x14] sm:$0xf]
    %v123 = vld [vmem:[#allocation6 + $0x18] sm:$0xf]
    %v124 = vld [vmem:[#allocation6 + $0x1c] sm:$0xf]
    %v125 = vld [vmem:[#allocation6 + $0x20] sm:$0xf]
    %v126 = vld [vmem:[#allocation6 + $0x24] sm:$0xf]
    %v127 = vld [vmem:[#allocation6 + $0x28] sm:$0xf]
    %v128 = vld [vmem:[#allocation6 + $0x2c] sm:$0xf]
    %v129 = vld [vmem:[#allocation6 + $0x30] sm:$0xf]
    %v130 = vld [vmem:[#allocation6 + $0x34] sm:$0xf]
    %v131 = vld [vmem:[#allocation6 + $0x38] sm:$0xf]
    %v132 = vld [vmem:[#allocation6 + $0x3c] sm:$0xf]
    %v149 = vunpack.c.l.b16 %v101
    %v150 = vunpack.c.l.b16 %v102
    %v151 = vunpack.c.l.b16 %v103
    %v152 = vunpack.c.l.b16 %v104
    %v153 = vunpack.c.l.b16 %v105
    %v154 = vunpack.c.l.b16 %v106
    %v155 = vunpack.c.l.b16 %v107
    %v156 = vunpack.c.l.b16 %v108
    %v157 = vunpack.c.l.b16 %v109
    %v158 = vunpack.c.l.b16 %v110
    %v159 = vunpack.c.l.b16 %v111
    %v160 = vunpack.c.l.b16 %v112
    %v161 = vunpack.c.l.b16 %v113
    %v162 = vunpack.c.l.b16 %v114
    %v163 = vunpack.c.l.b16 %v115
    %v164 = vunpack.c.l.b16 %v116
    %v165 = vpack.c.b16 %v150, %v149
    %v166 = vpack.c.b16 %v152, %v151
    %v167 = vpack.c.b16 %v154, %v153
    %v168 = vpack.c.b16 %v156, %v155
    %v169 = vpack.c.b16 %v158, %v157
    %v170 = vpack.c.b16 %v160, %v159
    %v171 = vpack.c.b16 %v162, %v161
    %v172 = vpack.c.b16 %v164, %v163
    %v197 = vunpack.c.l.b16 %v117
    %v198 = vunpack.c.l.b16 %v118
    %v199 = vunpack.c.l.b16 %v119
    %v200 = vunpack.c.l.b16 %v120
    %v201 = vunpack.c.l.b16 %v121
    %v202 = vunpack.c.l.b16 %v122
    %v203 = vunpack.c.l.b16 %v123
    %v204 = vunpack.c.l.b16 %v124
    %v205 = vunpack.c.l.b16 %v125
    %v206 = vunpack.c.l.b16 %v126
    %v207 = vunpack.c.l.b16 %v127
    %v208 = vunpack.c.l.b16 %v128
    %v209 = vunpack.c.l.b16 %v129
    %v210 = vunpack.c.l.b16 %v130
    %v211 = vunpack.c.l.b16 %v131
    %v212 = vunpack.c.l.b16 %v132
    %v213 = vpack.c.b16 %v198, %v197
    %v214 = vpack.c.b16 %v200, %v199
    %v215 = vpack.c.b16 %v202, %v201
    %v216 = vpack.c.b16 %v204, %v203
    %v217 = vpack.c.b16 %v206, %v205
    %v218 = vpack.c.b16 %v208, %v207
    %v219 = vpack.c.b16 %v210, %v209
    %v220 = vpack.c.b16 %v212, %v211
    %229 = vmatpush.bf16.msra.mxu0 %v220
    %230 = vmatpush.bf16.msra.mxu0 %v219
    %231 = vmatpush.bf16.msra.mxu0 %v218
    %232 = vmatpush.bf16.msra.mxu0 %v217
    %233 = vmatpush.bf16.msra.mxu0 %v216
    %234 = vmatpush.bf16.msra.mxu0 %v215
    %235 = vmatpush.bf16.msra.mxu0 %v214
    %236 = vmatpush.bf16.msra.mxu0 %v213
    %237 = vmatmul.bf16.gmra.mxu0 %v165
    %v238 = vpop.f32.mrf.mxu0
    %v239 = vadd.f32 0.0, %v238
    %v240 = vpop.f32.mrf.mxu0
    %v241 = vadd.f32 0.0, %v240
    %242 = vmatmul.bf16.gmra.mxu0 %v166
    %v243 = vpop.f32.mrf.mxu0
    %v244 = vadd.f32 0.0, %v243
    %v245 = vpop.f32.mrf.mxu0
    %v246 = vadd.f32 0.0, %v245
    %247 = vmatmul.bf16.gmra.mxu0 %v167
    %v248 = vpop.f32.mrf.mxu0
    %v249 = vadd.f32 0.0, %v248
    %v250 = vpop.f32.mrf.mxu0
    %v251 = vadd.f32 0.0, %v250
    %252 = vmatmul.bf16.gmra.mxu0 %v168
    %v253 = vpop.f32.mrf.mxu0
    %v254 = vadd.f32 0.0, %v253
    %v255 = vpop.f32.mrf.mxu0
    %v256 = vadd.f32 0.0, %v255
    %257 = vmatmul.bf16.gmra.mxu0 %v169
    %v258 = vpop.f32.mrf.mxu0
    %v259 = vadd.f32 0.0, %v258
    %v260 = vpop.f32.mrf.mxu0
    %v261 = vadd.f32 0.0, %v260
    %262 = vmatmul.bf16.gmra.mxu0 %v170
    %v263 = vpop.f32.mrf.mxu0
    %v264 = vadd.f32 0.0, %v263
    %v265 = vpop.f32.mrf.mxu0
    %v266 = vadd.f32 0.0, %v265
    %267 = vmatmul.bf16.gmra.mxu0 %v171
    %v268 = vpop.f32.mrf.mxu0
    %v269 = vadd.f32 0.0, %v268
    %v270 = vpop.f32.mrf.mxu0
    %v271 = vadd.f32 0.0, %v270
    %272 = vmatmul.bf16.gmra.mxu0 %v172
    %v273 = vpop.f32.mrf.mxu0
    %v274 = vadd.f32 0.0, %v273
    %v275 = vpop.f32.mrf.mxu0
    %v276 = vadd.f32 0.0, %v275
    %277 = vdwg.mxu0
    %v278 = vadd.f32 %v85, %v239
    %v279 = vadd.f32 %v86, %v241
    %v280 = vadd.f32 %v87, %v244
    %v281 = vadd.f32 %v88, %v246
    %v282 = vadd.f32 %v89, %v249
    %v283 = vadd.f32 %v90, %v251
    %v284 = vadd.f32 %v91, %v254
    %v285 = vadd.f32 %v92, %v256
    %v286 = vadd.f32 %v93, %v259
    %v287 = vadd.f32 %v94, %v261
    %v288 = vadd.f32 %v95, %v264
    %v289 = vadd.f32 %v96, %v266
    %v290 = vadd.f32 %v97, %v269
    %v291 = vadd.f32 %v98, %v271
    %v292 = vadd.f32 %v99, %v274
    %v293 = vadd.f32 %v100, %v276
    %294 = vst [vmem:[#allocation2] sm:$0xff] %v278
    %295 = vst [vmem:[#allocation2 + $0x8] sm:$0xff] %v279
    %296 = vst [vmem:[#allocation2 + $0x10] sm:$0xff] %v280
    %297 = vst [vmem:[#allocation2 + $0x18] sm:$0xff] %v281
    %298 = vst [vmem:[#allocation2 + $0x20] sm:$0xff] %v282
    %299 = vst [vmem:[#allocation2 + $0x28] sm:$0xff] %v283
    %300 = vst [vmem:[#allocation2 + $0x30] sm:$0xff] %v284
    %301 = vst [vmem:[#allocation2 + $0x38] sm:$0xff] %v285
    %302 = vst [vmem:[#allocation2 + $0x40] sm:$0xff] %v286
    %303 = vst [vmem:[#allocation2 + $0x48] sm:$0xff] %v287
    %304 = vst [vmem:[#allocation2 + $0x50] sm:$0xff] %v288
    %305 = vst [vmem:[#allocation2 + $0x58] sm:$0xff] %v289
    %306 = vst [vmem:[#allocation2 + $0x60] sm:$0xff] %v290
    %307 = vst [vmem:[#allocation2 + $0x68] sm:$0xff] %v291
    %308 = vst [vmem:[#allocation2 + $0x70] sm:$0xff] %v292
    %309 = vst [vmem:[#allocation2 + $0x78] sm:$0xff] %v293
    // Predicated region
    $region34: #{tpu_custom_call.1} parent=1 // pred_check
      %p310 = pneg %p65
    $region35: #{tpu_custom_call.1} parent=1 // pred_check_branch
      %312 = sbr.rel (%p310) target = $region37
    $region36: #{tpu_custom_call.1} parent=1 // pred_region
      %v313 = vld [vmem:[#allocation2] sm:$0xff]
      %v314 = vld [vmem:[#allocation2 + $0x8] sm:$0xff]
      %v315 = vld [vmem:[#allocation2 + $0x10] sm:$0xff]
      %v316 = vld [vmem:[#allocation2 + $0x18] sm:$0xff]
      %v317 = vld [vmem:[#allocation2 + $0x20] sm:$0xff]
      %v318 = vld [vmem:[#allocation2 + $0x28] sm:$0xff]
      %v319 = vld [vmem:[#allocation2 + $0x30] sm:$0xff]
      %v320 = vld [vmem:[#allocation2 + $0x38] sm:$0xff]
      %v321 = vld [vmem:[#allocation2 + $0x40] sm:$0xff]
      %v322 = vld [vmem:[#allocation2 + $0x48] sm:$0xff]
      %v323 = vld [vmem:[#allocation2 + $0x50] sm:$0xff]
      %v324 = vld [vmem:[#allocation2 + $0x58] sm:$0xff]
      %v325 = vld [vmem:[#allocation2 + $0x60] sm:$0xff]
      %v326 = vld [vmem:[#allocation2 + $0x68] sm:$0xff]
      %v327 = vld [vmem:[#allocation2 + $0x70] sm:$0xff]
      %v328 = vld [vmem:[#allocation2 + $0x78] sm:$0xff]
      %v329 = vpack.c.bf16 %v314, %v313
      %v330 = vpack.c.bf16 %v316, %v315
      %v331 = vpack.c.bf16 %v318, %v317
      %v332 = vpack.c.bf16 %v320, %v319
      %v333 = vpack.c.bf16 %v322, %v321
      %v334 = vpack.c.bf16 %v324, %v323
      %v335 = vpack.c.bf16 %v326, %v325
      %v336 = vpack.c.bf16 %v328, %v327
      %v337 = vld [vmem:[#allocation8] sm:$0xf]
      %v338 = vld [vmem:[#allocation8 + $0x4] sm:$0xf]
      %v339 = vld [vmem:[#allocation8 + $0x8] sm:$0xf]
      %v340 = vld [vmem:[#allocation8 + $0xc] sm:$0xf]
      %v341 = vld [vmem:[#allocation8 + $0x10] sm:$0xf]
      %v342 = vld [vmem:[#allocation8 + $0x14] sm:$0xf]
      %v343 = vld [vmem:[#allocation8 + $0x18] sm:$0xf]
      %v344 = vld [vmem:[#allocation8 + $0x1c] sm:$0xf]
      %v345 = vld [vmem:[#allocation8 + $0x20] sm:$0xf]
      %v346 = vld [vmem:[#allocation8 + $0x24] sm:$0xf]
      %v347 = vld [vmem:[#allocation8 + $0x28] sm:$0xf]
      %v348 = vld [vmem:[#allocation8 + $0x2c] sm:$0xf]
      %v349 = vld [vmem:[#allocation8 + $0x30] sm:$0xf]
      %v350 = vld [vmem:[#allocation8 + $0x34] sm:$0xf]
      %v351 = vld [vmem:[#allocation8 + $0x38] sm:$0xf]
      %v352 = vld [vmem:[#allocation8 + $0x3c] sm:$0xf]
      %v353 = vld [vmem:[%s3] sm:$0x1]
      %v355 = vperm.slane %v353, 0
      %v373 = vunpack.c.l.b16 %v337
      %v374 = vunpack.c.l.b16 %v338
      %v375 = vunpack.c.l.b16 %v339
      %v376 = vunpack.c.l.b16 %v340
      %v377 = vunpack.c.l.b16 %v341
      %v378 = vunpack.c.l.b16 %v342
      %v379 = vunpack.c.l.b16 %v343
      %v380 = vunpack.c.l.b16 %v344
      %v381 = vunpack.c.l.b16 %v345
      %v382 = vunpack.c.l.b16 %v346
      %v383 = vunpack.c.l.b16 %v347
      %v384 = vunpack.c.l.b16 %v348
      %v385 = vunpack.c.l.b16 %v349
      %v386 = vunpack.c.l.b16 %v350
      %v387 = vunpack.c.l.b16 %v351
      %v388 = vunpack.c.l.b16 %v352
      %v389 = vpack.c.b16 %v374, %v373
      %v390 = vpack.c.b16 %v376, %v375
      %v391 = vpack.c.b16 %v378, %v377
      %v392 = vpack.c.b16 %v380, %v379
      %v393 = vpack.c.b16 %v382, %v381
      %v394 = vpack.c.b16 %v384, %v383
      %v395 = vpack.c.b16 %v386, %v385
      %v396 = vpack.c.b16 %v388, %v387
      %405 = vmatpush.bf16.msra.mxu0 %v396
      %406 = vmatpush.bf16.msra.mxu0 %v395
      %407 = vmatpush.bf16.msra.mxu0 %v394
      %408 = vmatpush.bf16.msra.mxu0 %v393
      %409 = vmatpush.bf16.msra.mxu0 %v392
      %410 = vmatpush.bf16.msra.mxu0 %v391
      %411 = vmatpush.bf16.msra.mxu0 %v390
      %412 = vmatpush.bf16.msra.mxu0 %v389
      %413 = vmatmul.bf16.gmra.mxu0 %v329
      %v414 = vpop.f32.mrf.mxu0
      %v415 = vadd.f32 %v355, %v414
      %v416 = vpop.f32.mrf.mxu0
      %v417 = vadd.f32 %v355, %v416
      %418 = vmatmul.bf16.gmra.mxu0 %v330
      %v419 = vpop.f32.mrf.mxu0
      %v420 = vadd.f32 %v355, %v419
      %v421 = vpop.f32.mrf.mxu0
      %v422 = vadd.f32 %v355, %v421
      %423 = vmatmul.bf16.gmra.mxu0 %v331
      %v424 = vpop.f32.mrf.mxu0
      %v425 = vadd.f32 %v355, %v424
      %v426 = vpop.f32.mrf.mxu0
      %v427 = vadd.f32 %v355, %v426
      %428 = vmatmul.bf16.gmra.mxu0 %v332
      %v429 = vpop.f32.mrf.mxu0
      %v430 = vadd.f32 %v355, %v429
      %v431 = vpop.f32.mrf.mxu0
      %v432 = vadd.f32 %v355, %v431
      %433 = vmatmul.bf16.gmra.mxu0 %v333
      %v434 = vpop.f32.mrf.mxu0
      %v435 = vadd.f32 %v355, %v434
      %v436 = vpop.f32.mrf.mxu0
      %v437 = vadd.f32 %v355, %v436
      %438 = vmatmul.bf16.gmra.mxu0 %v334
      %v439 = vpop.f32.mrf.mxu0
      %v440 = vadd.f32 %v355, %v439
      %v441 = vpop.f32.mrf.mxu0
      %v442 = vadd.f32 %v355, %v441
      %443 = vmatmul.bf16.gmra.mxu0 %v335
      %v444 = vpop.f32.mrf.mxu0
      %v445 = vadd.f32 %v355, %v444
      %v446 = vpop.f32.mrf.mxu0
      %v447 = vadd.f32 %v355, %v446
      %448 = vmatmul.bf16.gmra.mxu0 %v336
      %v449 = vpop.f32.mrf.mxu0
      %v450 = vadd.f32 %v355, %v449
      %v451 = vpop.f32.mrf.mxu0
      %v452 = vadd.f32 %v355, %v451
      %453 = vdwg.mxu0
      %v454 = vmax.f32 %v415, 0.0
      %v455 = vmax.f32 %v417, 0.0
      %v456 = vmax.f32 %v420, 0.0
      %v457 = vmax.f32 %v422, 0.0
      %v458 = vmax.f32 %v425, 0.0
      %v459 = vmax.f32 %v427, 0.0
      %v460 = vmax.f32 %v430, 0.0
      %v461 = vmax.f32 %v432, 0.0
      %v462 = vmax.f32 %v435, 0.0
      %v463 = vmax.f32 %v437, 0.0
      %v464 = vmax.f32 %v440, 0.0
      %v465 = vmax.f32 %v442, 0.0
      %v466 = vmax.f32 %v445, 0.0
      %v467 = vmax.f32 %v447, 0.0
      %v468 = vmax.f32 %v450, 0.0
      %v469 = vmax.f32 %v452, 0.0
      %v470 = vpack.c.bf16 %v454, %v454
      %v471 = vpack.c.bf16 %v455, %v455
      %v472 = vpack.c.bf16 %v456, %v456
      %v473 = vpack.c.bf16 %v457, %v457
      %v474 = vpack.c.bf16 %v458, %v458
      %v475 = vpack.c.bf16 %v459, %v459
      %v476 = vpack.c.bf16 %v460, %v460
      %v477 = vpack.c.bf16 %v461, %v461
      %v478 = vpack.c.bf16 %v462, %v462
      %v479 = vpack.c.bf16 %v463, %v463
      %v480 = vpack.c.bf16 %v464, %v464
      %v481 = vpack.c.bf16 %v465, %v465
      %v482 = vpack.c.bf16 %v466, %v466
      %v483 = vpack.c.bf16 %v467, %v467
      %v484 = vpack.c.bf16 %v468, %v468
      %v485 = vpack.c.bf16 %v469, %v469
      %486 = vst [vmem:[#allocation9] sm:$0xf] %v470
      %487 = vst [vmem:[#allocation9 + $0x4] sm:$0xf] %v471
      %488 = vst [vmem:[#allocation9 + $0x8] sm:$0xf] %v472
      %489 = vst [vmem:[#allocation9 + $0xc] sm:$0xf] %v473
      %490 = vst [vmem:[#allocation9 + $0x10] sm:$0xf] %v474
      %491 = vst [vmem:[#allocation9 + $0x14] sm:$0xf] %v475
      %492 = vst [vmem:[#allocation9 + $0x18] sm:$0xf] %v476
      %493 = vst [vmem:[#allocation9 + $0x1c] sm:$0xf] %v477
      %494 = vst [vmem:[#allocation9 + $0x20] sm:$0xf] %v478
      %495 = vst [vmem:[#allocation9 + $0x24] sm:$0xf] %v479
      %496 = vst [vmem:[#allocation9 + $0x28] sm:$0xf] %v480
      %497 = vst [vmem:[#allocation9 + $0x2c] sm:$0xf] %v481
      %498 = vst [vmem:[#allocation9 + $0x30] sm:$0xf] %v482
      %499 = vst [vmem:[#allocation9 + $0x34] sm:$0xf] %v483
      %500 = vst [vmem:[#allocation9 + $0x38] sm:$0xf] %v484
      %501 = vst [vmem:[#allocation9 + $0x3c] sm:$0xf] %v485
    $region37: #{tpu_custom_call.1} parent=1 // pred_fallthru
      _
    // Predicated region
    $region38: #{tpu_custom_call.1} parent=1 // pred_check
      _
    $region39: #{tpu_custom_call.1} parent=1 // pred_check_branch
      %503 = sbr.rel (0) target = $region41
    $region40: #{tpu_custom_call.1} parent=1 // pred_region
      %505 = vsyncadd [#allocation5], 0
      %s506 = sshll.u32 [#allocation9], 4
      %s507 = int_to_ptr.vmem [resolvable:$true] %s506
      %s508 = sshll.u32 %s4, 4
      %s509 = int_to_ptr.hbm [resolvable:$true] %s508
      %514 = dma.vmem_to_hbm [thread:$0]  %s507, 1024, %s509, [#allocation5], 64, 64, 4
    $region41: #{tpu_custom_call.1} parent=1 // pred_fallthru
      _
    // Predicated region
    $region42: #{tpu_custom_call.1} parent=1 // pred_check
      _
    $region43: #{tpu_custom_call.1} parent=1 // pred_check_branch
      %516 = sbr.rel (0) target = $region45
    $region44: #{tpu_custom_call.1} parent=1 // pred_region
      %518 = dma.done [#allocation5], 1024
    $region45: #{tpu_custom_call.1} parent=1 // pred_fallthru
      _
    %519 = vsyncpa [#allocation4], 1
    %520 = vsyncpa [#allocation7], 1
    %521 = vsyncpa [#allocation5], 1

</llo_original>
